<compile_context>
chip_gen: v6e
topology: v6e:2x2x1
jax: 0.10.0
libtpu: 0.0.40
codegen_flags: <defaults>
</compile_context>

<pallas_src>
import jax
import jax.numpy as jnp
from jax.experimental import pallas as pl
from jax.experimental.pallas import tpu as pltpu


def _pos_embed_kernel(emb_ref, out_ref):
    """emb_ref: VMEM (TS, D)   -- TS embedding-table rows for this grid step
       out_ref: VMEM (TS, B*D) -- lane-dense output slab (each row repeated B x)
    """
    reps = out_ref.shape[-1] // emb_ref.shape[-1]   # == B (static)
    out_ref[...] = jnp.tile(emb_ref[...], (1, reps))


def _round_up(x, m):
    return ((x + m - 1) // m) * m


def _choose_tile_s(S, B, D, itemsize):
    """Largest multiple-of-8 sequence tile whose double-buffered in+out tiles
    fit a conservative VMEM budget (headroom for v7x's 64 MiB physical VMEM)."""
    vmem_budget = 32 * 1024 * 1024            # bytes reserved for pipelined tiles
    per_row = 2 * (D + B * D) * itemsize      # double-buffered input + output row
    ts = vmem_budget // max(per_row, 1)
    ts = max(8, (ts // 8) * 8)                # sublane-aligned
    return min(ts, _round_up(S, 8))           # never larger than needed


def position_embedding_learned_1d(x, emb_table):
    """x: array of shape (S, B, ...); only its leading two dims are used.
       emb_table: (dic_len, D) learned position-embedding weights.
       returns: (S, B, D) position embeddings (same dtype as emb_table)."""
    S, B = int(x.shape[0]), int(x.shape[1])
    dic_len, D = emb_table.shape
    assert S <= dic_len, "sequence length exceeds embedding dictionary size"

    ts = _choose_tile_s(S, B, D, jnp.dtype(emb_table.dtype).itemsize)
    grid = (pl.cdiv(S, ts),)

    out_flat = pl.pallas_call(
        _pos_embed_kernel,
        out_shape=jax.ShapeDtypeStruct((S, B * D), emb_table.dtype),
        grid_spec=pl.GridSpec(
            grid=grid,
            # Block row index == grid index: DMAs rows [i*ts, i*ts+ts) of the
            # table straight into VMEM (the arange "gather" at DMA level).
            in_specs=[pl.BlockSpec((ts, D), lambda i: (i, 0))],
            out_specs=pl.BlockSpec((ts, B * D), lambda i: (i, 0)),
        ),
        compiler_params=pltpu.CompilerParams(
            dimension_semantics=("parallel",),        # disjoint output blocks
            vmem_limit_bytes=48 * 1024 * 1024,
        ),
    )(emb_table)

    # (S, B*D) -> (S, B, D): contiguous reshape, free in the wrapper.
    return out_flat.reshape(S, B, D)


if __name__ == "__main__":
    key = jax.random.PRNGKey(0)
    kx, kw, kx2, kw2 = jax.random.split(key, 4)

    # Case 1: small, module-consistent shapes.
    S, B, FEAT = 8, 4, 32        # x: (seq, batch, feature) -- only (S, B) used
    DIC_LEN, D_MODEL = 16, 32    # nn.Embedding(dic_len, d_model)
    x = jax.random.normal(kx, (S, B, FEAT), dtype=jnp.float32)
    emb_table = jax.random.normal(kw, (DIC_LEN, D_MODEL), dtype=jnp.float32)

    out = jax.block_until_ready(position_embedding_learned_1d(x, emb_table))
    ref = jnp.broadcast_to(emb_table[:S][:, None, :], (S, B, D_MODEL))
    assert out.shape == (S, B, D_MODEL), out.shape
    assert out.dtype == emb_table.dtype
    assert jnp.allclose(out, ref), "mismatch vs reference (case 1)"

    # Case 2: non-multiple-of-8 sequence length + lane-wide d_model
    # (exercises the masked final output block and full-lane stores).
    S2, B2, FEAT2 = 12, 2, 16
    DIC2, D2 = 32, 128
    x2 = jax.random.normal(kx2, (S2, B2, FEAT2), dtype=jnp.float32)
    emb2 = jax.random.normal(kw2, (DIC2, D2), dtype=jnp.float32)

    out2 = jax.block_until_ready(position_embedding_learned_1d(x2, emb2))
    ref2 = jnp.broadcast_to(emb2[:S2][:, None, :], (S2, B2, D2))
    assert out2.shape == (S2, B2, D2), out2.shape
    assert jnp.allclose(out2, ref2), "mismatch vs reference (case 2)"

    print("KERNEL_OK")
</pallas_src>

<mosaic_0001>
module attributes {stable_mosaic.version = 11 : i64} {
  func.func @_pos_embed_kernel(%arg0: i32, %arg1: memref<8x32xf32, #tpu.memory_space<vmem>>, %arg2: memref<8x128xf32, #tpu.memory_space<vmem>>) attributes {dimension_semantics = [#tpu.dimension_semantics<parallel>], iteration_bounds = array<i64: 1>, scalar_prefetch = 0 : i64, scratch_operands = 0 : i64, tpu.core_type = #tpu.core_type<tc>, window_params = [{transform_indices = @transform_0, window_bounds = array<i64: 8, 32>}, {transform_indices = @transform_1, window_bounds = array<i64: 8, 128>}]} {
    %c0 = arith.constant 0 : index
    %c0_0 = arith.constant 0 : index
    %0 = vector.load %arg1[%c0, %c0_0] : memref<8x32xf32, #tpu.memory_space<vmem>>, vector<8x32xf32>
    %1 = tpu.concatenate %0, %0, %0, %0 in 1 : vector<8x32xf32>, vector<8x32xf32>, vector<8x32xf32>, vector<8x32xf32> -> vector<8x128xf32>
    %c0_1 = arith.constant 0 : index
    %c0_2 = arith.constant 0 : index
    %2 = vector.load %arg2[%c0_1, %c0_2] : memref<8x128xf32, #tpu.memory_space<vmem>>, vector<8x128xf32>
    tpu.vector_store %arg2[%c0_1, %c0_2], %1 {strides = array<i32>} : memref<8x128xf32, #tpu.memory_space<vmem>>, vector<8x128xf32>,
    return
  }
  func.func @transform_0(%arg0: i32) -> (i32, i32) {
    %c0_i32 = arith.constant 0 : i32
    %c0_i32_0 = arith.constant 0 : i32
    return %arg0, %c0_i32 : i32, i32
  }
  func.func @transform_1(%arg0: i32) -> (i32, i32) {
    %c0_i32 = arith.constant 0 : i32
    %c0_i32_0 = arith.constant 0 : i32
    return %arg0, %c0_i32 : i32, i32
  }
}

</mosaic_0001>

<llo_original>
// kernel: tpu_custom_call.1
$region0: #{tpu_custom_call.1}
  #allocation0 [shape = 'u32[]', space=smem, size = 0x4, offset = 0x4, fixed_abs, tag = 'smem constant byte address 0x4 - core index']
  #allocation1 [shape = 'u32[144,128]{1,0:T(1,128)}', space=vmem, size = 0x12000, scoped, tag = 'internal scratch']
  %s0 = inlined_call_operand.hbm [shape: f32[16,32], index: 0, kind: input, shape index: {}]
  %s1 = inlined_call_operand.hbm [shape: f32[8,128], index: 1, kind: output, shape index: {}]
  %s2 = sld [smem:[#allocation0]]
  $region18: #{tpu_custom_call.1} parent=0
    _
  %s4 = ssub.s32 1, %s2
  %s5 = scalar_select 0, %s4, %s2
  $region1: #{tpu_custom_call.1} parent=0
    #allocation2 [shape = 'u8[4096]{0}', space=vmem, size = 0x1000, scoped, tag = 'input window, operand 0, single buffered']
    #allocation3 [shape = 's32[1]{0}', space=sflag, size = 0x4, scoped, tag = 'scoped memory for tpu_custom_call.1']
    #allocation4 [shape = 's32[1]{0}', space=sflag, size = 0x4, scoped, tag = 'scoped memory for tpu_custom_call.1']
    #allocation5 [shape = 'u8[4096]{0}', space=vmem, size = 0x1000, scoped, tag = 'output window, operand 0, single buffered']
    %6 = vsyncpa [#allocation3], 0
    %7 = vsyncpa [#allocation4], 0
    // Predicated region
    $region2: #{tpu_custom_call.1} parent=1 // pred_check
      _
    $region3: #{tpu_custom_call.1} parent=1 // pred_check_branch
      %9 = sbr.rel (0) target = $region5
    $region4: #{tpu_custom_call.1} parent=1 // pred_region
      %s11 = ssub.s32 128, 128
      %12 = vsyncadd [#allocation3], %s11
      %s14 = sshll.u32 [#allocation2], 4
      %s15 = int_to_ptr.vmem [resolvable:$true] %s14
      %17 = dma.hbm_to_vmem [thread:$0]  %s0, 128, %s15, [#allocation3]
    $region5: #{tpu_custom_call.1} parent=1 // pred_fallthru
      _
    // Predicated region
    $region6: #{tpu_custom_call.1} parent=1 // pred_check
      _
    $region7: #{tpu_custom_call.1} parent=1 // pred_check_branch
      %19 = sbr.rel (0) target = $region9
    $region8: #{tpu_custom_call.1} parent=1 // pred_region
      %20 = dma.done [#allocation3], 128
    $region9: #{tpu_custom_call.1} parent=1 // pred_fallthru
      _
    %v21 = vld [vmem:[#allocation2] sm:$0xff]
    %23 = vrot.lane.b32.xlu0 %v21, 32
    %v24 = vpop.permute.xlu0 %23
    %26 = vrot.lane.b32.xlu0 %v21, 64
    %v27 = vpop.permute.xlu0 %26
    %29 = vrot.lane.b32.xlu0 %v21, 96
    %v30 = vpop.permute.xlu0 %29
    %vm32 = vcmask 261120
    %v33 = vsel %vm32, %v21, %v24
    %vm34 = vcmask 523264
    %v35 = vsel %vm34, %v33, %v27
    %vm36 = vcmask 785408
    %v37 = vsel %vm36, %v35, %v30
    %38 = vst [vmem:[#allocation5] sm:$0xff] %v37
    // Predicated region
    $region10: #{tpu_custom_call.1} parent=1 // pred_check
      _
    $region11: #{tpu_custom_call.1} parent=1 // pred_check_branch
      %40 = sbr.rel (0) target = $region13
    $region12: #{tpu_custom_call.1} parent=1 // pred_region
      %s42 = ssub.s32 128, 128
      %43 = vsyncadd [#allocation4], %s42
      %s45 = sshll.u32 [#allocation5], 4
      %s46 = int_to_ptr.vmem [resolvable:$true] %s45
      %48 = dma.vmem_to_hbm [thread:$0]  %s46, 128, %s1, [#allocation4]
    $region13: #{tpu_custom_call.1} parent=1 // pred_fallthru
      _
    // Predicated region
    $region14: #{tpu_custom_call.1} parent=1 // pred_check
      _
    $region15: #{tpu_custom_call.1} parent=1 // pred_check_branch
      %50 = sbr.rel (0) target = $region17
    $region16: #{tpu_custom_call.1} parent=1 // pred_region
      %51 = dma.done [#allocation4], 128
    $region17: #{tpu_custom_call.1} parent=1 // pred_fallthru
      _
    %52 = vsyncpa [#allocation3], 1
    %53 = vsyncpa [#allocation4], 1

</llo_original>
